<compile_context>
chip_gen: v5e
topology: v5e:2x2
jax: 0.10.0
libtpu: 0.0.40
codegen_flags: <defaults>
</compile_context>

<pallas_src>
import jax
import jax.numpy as jnp
from jax import lax
from jax.experimental import pallas as pl
from jax.experimental.pallas import tpu as pltpu


def _round_up(x, m):
    return ((x + m - 1) // m) * m


def conv_bn_relu_kernel(x_ref, w_ref, scale_ref, shift_ref, o_ref):
    # x_ref    : (KC_pad, TL)        im2col'd input tile for (batch n, L-tile l)   (bf16)
    # w_ref    : (C_out_pad, KC_pad) fused conv weights (tap-major contraction)    (bf16)
    # scale_ref: (C_out_pad, 1)      folded BN scale = gamma / sqrt(var + eps)     (f32)
    # shift_ref: (C_out_pad, 1)      folded BN shift = beta + (bias - mean)*scale  (f32)
    # o_ref    : (C_out_pad, TL)     lane-dense NCL output tile                    (bf16)
    acc = jnp.dot(w_ref[...], x_ref[...], preferred_element_type=jnp.float32)
    # fused eval-mode BatchNorm1d (+ folded conv bias) + ReLU; dropout = identity
    y = acc * scale_ref[...] + shift_ref[...]
    o_ref[...] = jnp.maximum(y, 0.0).astype(o_ref.dtype)


def conv_block_forward(x_ncl, weight, bias, gamma, beta, running_mean, running_var,
                       kernel_size, eps=1e-5, tile_l=512,
                       compute_dtype=jnp.bfloat16, store_dtype=jnp.bfloat16):
    """x_ncl: (N, C_in, L) -> (N, C_out, L_out), matching PyTorch Conv1d/BN/ReLU (eval)."""
    N, C_in, L = x_ncl.shape
    C_out = weight.shape[0]
    K = kernel_size
    pad = K // 2
    L_out = L + 2 * pad - K + 1

    # ---- tile geometry: L on lanes (TL multiple of 128), C_out on sublanes (pad to 16
    #      so bf16-packed stores are clean), contraction K*C_in padded to a multiple of 8 ----
    TL = _round_up(max(1, min(tile_l, L_out)), 128)
    L_tiles = pl.cdiv(L_out, TL)
    L_out_pad = L_tiles * TL
    C_out_pad = _round_up(C_out, 16)
    KC = K * C_in
    KC_pad = _round_up(KC, 8)

    # ---- wrapper glue (plain JAX, fused by XLA over the tiny input): pad + im2col + cast ----
    L_src = L_out_pad + K - 1            # padded length so every tap slice is in-bounds
    x_p = jnp.pad(x_ncl.astype(compute_dtype),
                  ((0, 0), (0, 0), (pad, L_src - pad - L)))            # (N, C_in, L_src)
    # row (k*C_in + ci) of the im2col input at column j == x[ci, j + k - pad]
    x_im2col = jnp.concatenate([x_p[:, :, k:k + L_out_pad] for k in range(K)],
                               axis=1)                                 # (N, KC, L_out_pad)
    x_im2col = jnp.pad(x_im2col, ((0, 0), (0, KC_pad - KC), (0, 0)))   # (N, KC_pad, L_out_pad)

    # weights: (C_out, C_in, K) -> (C_out, K*C_in), matching the im2col row order k*C_in + ci
    w2 = jnp.transpose(weight, (0, 2, 1)).reshape(C_out, KC)
    w2 = jnp.pad(w2, ((0, C_out_pad - C_out), (0, KC_pad - KC))).astype(compute_dtype)

    scale = gamma / jnp.sqrt(running_var + eps)                        # (C_out,)
    shift = beta + (bias - running_mean) * scale                       # conv bias folded in
    scale2 = jnp.pad(scale, (0, C_out_pad - C_out)).reshape(C_out_pad, 1).astype(jnp.float32)
    shift2 = jnp.pad(shift, (0, C_out_pad - C_out)).reshape(C_out_pad, 1).astype(jnp.float32)

    out = pl.pallas_call(
        conv_bn_relu_kernel,
        out_shape=jax.ShapeDtypeStruct((N, C_out_pad, L_out_pad), store_dtype),
        grid_spec=pltpu.PrefetchScalarGridSpec(
            num_scalar_prefetch=0,
            grid=(N, L_tiles),
            in_specs=[
                # streamed per (n, l): small (KC_pad, TL) tile, lane-dense along L
                pl.BlockSpec((None, KC_pad, TL), lambda n, l: (n, 0, l)),
                pl.BlockSpec((C_out_pad, KC_pad), lambda n, l: (0, 0)),   # fused weights
                pl.BlockSpec((C_out_pad, 1), lambda n, l: (0, 0)),        # bn scale
                pl.BlockSpec((C_out_pad, 1), lambda n, l: (0, 0)),        # bn shift (+bias)
            ],
            out_specs=pl.BlockSpec((None, C_out_pad, TL), lambda n, l: (n, 0, l)),
        ),
        compiler_params=pltpu.CompilerParams(
            dimension_semantics=("parallel", "parallel")),
    )(x_im2col, w2, scale2, shift2)

    # output is already NCL: slice off channel / length alignment padding and cast to f32
    # (single fused pass; padded columns hold ReLU(shift) and are discarded here).
    return out[:, :C_out, :L_out].astype(jnp.float32)


def reference_forward(x_ncl, weight, bias, gamma, beta, running_mean, running_var,
                      kernel_size, eps=1e-5):
    pad = kernel_size // 2
    y = lax.conv_general_dilated(
        x_ncl, weight,
        window_strides=(1,),
        padding=[(pad, pad)],
        dimension_numbers=("NCH", "OIH", "NCH"),
        precision=lax.Precision.HIGHEST,
    ) + bias[None, :, None]
    y = (y - running_mean[None, :, None]) / jnp.sqrt(running_var[None, :, None] + eps)
    y = y * gamma[None, :, None] + beta[None, :, None]
    return jnp.maximum(y, 0.0)


def _run_case(key, N, d_in, d_out, L, K, tile_l):
    kx, kw, kb, kg, kbe, km, kv = jax.random.split(key, 7)
    x = jax.random.normal(kx, (N, d_in, L), dtype=jnp.float32)
    weight = jax.random.normal(kw, (d_out, d_in, K), dtype=jnp.float32) * 0.1
    bias = jax.random.normal(kb, (d_out,), dtype=jnp.float32) * 0.1
    gamma = 1.0 + 0.1 * jax.random.normal(kg, (d_out,), dtype=jnp.float32)
    beta = 0.1 * jax.random.normal(kbe, (d_out,), dtype=jnp.float32)
    running_mean = 0.1 * jax.random.normal(km, (d_out,), dtype=jnp.float32)
    running_var = 1.0 + 0.1 * jax.random.uniform(kv, (d_out,), dtype=jnp.float32)

    out = conv_block_forward(x, weight, bias, gamma, beta, running_mean, running_var,
                             K, tile_l=tile_l)
    out = jax.block_until_ready(out)

    # reference sees the same bf16-quantized matmul operands (kernel accumulates in f32,
    # then stores bf16 -> compare at bf16-level tolerance)
    xq = x.astype(jnp.bfloat16).astype(jnp.float32)
    wq = weight.astype(jnp.bfloat16).astype(jnp.float32)
    ref = reference_forward(xq, wq, bias, gamma, beta, running_mean, running_var, K)

    pad = K // 2
    L_out = L + 2 * pad - K + 1
    assert out.shape == ref.shape == (N, d_out, L_out), (out.shape, ref.shape)
    assert jnp.allclose(out, ref, atol=2e-2, rtol=2e-2), "mismatch vs JAX reference"


if __name__ == "__main__":
    key = jax.random.PRNGKey(0)
    k1, k2, k3 = jax.random.split(key, 3)

    # Small shapes consistent with the module's forward: src is (N, d_in, L)
    _run_case(k1, N=2, d_in=4, d_out=8, L=16, K=3, tile_l=512)    # single L tile
    _run_case(k2, N=2, d_in=3, d_out=6, L=20, K=5, tile_l=512)    # odd channel counts -> padding paths
    _run_case(k3, N=2, d_in=4, d_out=8, L=300, K=3, tile_l=128)   # multi-tile L grid + tail pad

    print("KERNEL_OK")
</pallas_src>

<mosaic_0001>
module attributes {stable_mosaic.version = 11 : i64} {
  func.func @conv_bn_relu_kernel(%arg0: i32, %arg1: i32, %arg2: memref<1x16x128xbf16, #tpu.memory_space<vmem>>, %arg3: memref<16x16xbf16, #tpu.memory_space<vmem>>, %arg4: memref<16x1xf32, #tpu.memory_space<vmem>>, %arg5: memref<16x1xf32, #tpu.memory_space<vmem>>, %arg6: memref<1x16x128xbf16, #tpu.memory_space<vmem>>) attributes {dimension_semantics = [#tpu.dimension_semantics<parallel>, #tpu.dimension_semantics<parallel>], iteration_bounds = array<i64: 2, 1>, scalar_prefetch = 0 : i64, scratch_operands = 0 : i64, tpu.core_type = #tpu.core_type<tc>, window_params = [{transform_indices = @transform_0, window_bounds = array<i64: 1, 16, 128>}, {pipeline_mode = #tpu.pipeline_mode<synchronous>, transform_indices = @transform_1, window_bounds = array<i64: 16, 16>}, {pipeline_mode = #tpu.pipeline_mode<synchronous>, transform_indices = @transform_2, window_bounds = array<i64: 16, 1>}, {pipeline_mode = #tpu.pipeline_mode<synchronous>, transform_indices = @transform_3, window_bounds = array<i64: 16, 1>}, {transform_indices = @transform_4, window_bounds = array<i64: 1, 16, 128>}]} {
    %c0 = arith.constant 0 : index
    %c0_0 = arith.constant 0 : index
    %0 = vector.load %arg3[%c0, %c0_0] : memref<16x16xbf16, #tpu.memory_space<vmem>>, vector<16x16xbf16>
    %c0_1 = arith.constant 0 : index
    %c0_2 = arith.constant 0 : index
    %c0_3 = arith.constant 0 : index
    %1 = vector.load %arg2[%c0_1, %c0_2, %c0_3] : memref<1x16x128xbf16, #tpu.memory_space<vmem>>, vector<1x16x128xbf16>
    %2 = vector.shape_cast %1 : vector<1x16x128xbf16> to vector<16x128xbf16>
    %cst = arith.constant dense<0.000000e+00> : vector<16x128xf32>
    %3 = tpu.matmul %0, %2, %cst {dimension_numbers = #tpu.dot_dimension_numbers<[1], [0], [0], [1], [0, 0, 1, 1], [], []>} : vector<16x16xbf16>, vector<16x128xbf16>, vector<16x128xf32> -> vector<16x128xf32>
    %c0_4 = arith.constant 0 : index
    %c0_5 = arith.constant 0 : index
    %4 = vector.load %arg4[%c0_4, %c0_5] : memref<16x1xf32, #tpu.memory_space<vmem>>, vector<16x1xf32>
    %5 = vector.broadcast %4 : vector<16x1xf32> to vector<16x128xf32>
    %6 = arith.mulf %3, %5 : vector<16x128xf32>
    %c0_6 = arith.constant 0 : index
    %c0_7 = arith.constant 0 : index
    %7 = vector.load %arg5[%c0_6, %c0_7] : memref<16x1xf32, #tpu.memory_space<vmem>>, vector<16x1xf32>
    %8 = vector.broadcast %7 : vector<16x1xf32> to vector<16x128xf32>
    %9 = arith.addf %6, %8 : vector<16x128xf32>
    %cst_8 = arith.constant 0.000000e+00 : f32
    %10 = vector.broadcast %cst_8 : f32 to vector<16x128xf32>
    %11 = arith.maximumf %9, %10 : vector<16x128xf32>
    %12 = arith.truncf %11 : vector<16x128xf32> to vector<16x128xbf16>
    %c0_9 = arith.constant 0 : index
    %c0_10 = arith.constant 0 : index
    %c0_11 = arith.constant 0 : index
    %13 = vector.load %arg6[%c0_9, %c0_10, %c0_11] : memref<1x16x128xbf16, #tpu.memory_space<vmem>>, vector<1x16x128xbf16>
    %14 = vector.shape_cast %13 : vector<1x16x128xbf16> to vector<16x128xbf16>
    %15 = vector.shape_cast %12 : vector<16x128xbf16> to vector<1x16x128xbf16>
    tpu.vector_store %arg6[%c0_9, %c0_10, %c0_11], %15 {strides = array<i32>} : memref<1x16x128xbf16, #tpu.memory_space<vmem>>, vector<1x16x128xbf16>,
    return
  }
  func.func @transform_0(%arg0: i32, %arg1: i32) -> (i32, i32, i32) {
    %c0_i32 = arith.constant 0 : i32
    %c0_i32_0 = arith.constant 0 : i32
    return %arg0, %c0_i32, %arg1 : i32, i32, i32
  }
  func.func @transform_1(%arg0: i32, %arg1: i32) -> (i32, i32) {
    %c0_i32 = arith.constant 0 : i32
    %c0_i32_0 = arith.constant 0 : i32
    %c0_i32_1 = arith.constant 0 : i32
    return %c0_i32, %c0_i32_0 : i32, i32
  }
  func.func @transform_2(%arg0: i32, %arg1: i32) -> (i32, i32) {
    %c0_i32 = arith.constant 0 : i32
    %c0_i32_0 = arith.constant 0 : i32
    %c0_i32_1 = arith.constant 0 : i32
    return %c0_i32, %c0_i32_0 : i32, i32
  }
  func.func @transform_3(%arg0: i32, %arg1: i32) -> (i32, i32) {
    %c0_i32 = arith.constant 0 : i32
    %c0_i32_0 = arith.constant 0 : i32
    %c0_i32_1 = arith.constant 0 : i32
    return %c0_i32, %c0_i32_0 : i32, i32
  }
  func.func @transform_4(%arg0: i32, %arg1: i32) -> (i32, i32, i32) {
    %c0_i32 = arith.constant 0 : i32
    %c0_i32_0 = arith.constant 0 : i32
    return %arg0, %c0_i32, %arg1 : i32, i32, i32
  }
}

</mosaic_0001>

<llo_original>
// kernel: tpu_custom_call.1
$region0: #{tpu_custom_call.1}
  #allocation0 [shape = 'u32[]', space=smem, size = 0x4, offset = 0x4, fixed_abs, tag = 'smem constant byte address 0x4 - core index']
  #allocation1 [shape = 'u32[72,128]{1,0:T(1,128)}', space=vmem, size = 0x9000, scoped, tag = 'internal scratch']
  %s0 = inlined_call_operand.vmem [shape: bf16[2,16,128], index: 0, kind: input, shape index: {}]
  %s1 = inlined_call_operand.vmem [shape: bf16[16,16], index: 1, kind: input, shape index: {}]
  %s2 = inlined_call_operand.vmem [shape: f32[16,1], index: 2, kind: input, shape index: {}]
  %s3 = inlined_call_operand.vmem [shape: f32[16,1], index: 3, kind: input, shape index: {}]
  %s4 = inlined_call_operand.hbm [shape: bf16[2,16,128], index: 4, kind: output, shape index: {}]
  %s5 = sld [smem:[#allocation0]]
  $region49: #{tpu_custom_call.1} parent=0
    _
  %s7 = ssub.s32 1, %s5
  %s8 = scalar_select 0, %s7, %s5
  $region1: #{tpu_custom_call.1} parent=0
    #allocation2 [shape = 'u8[8192]{0}', space=vmem, size = 0x2000, scoped, tag = 'output window, operand 0']
    #allocation3 [shape = 's32[2]{0}', space=sflag, size = 0x8, scoped, tag = 'scoped memory for tpu_custom_call.1']
    %9 = vsyncpa [#allocation3], 0
    %s10 = scalar_lea.sflag [#allocation3], 1
    %11 = vsyncpa %s10, 0
    loop: start=0, step=1, limit=4
    $region2: #{tpu_custom_call.1} parent=1 // loop_pre_header
      _
    $region3: #{tpu_custom_call.1} parent=1 // loop_header
      %s13 = sphi 0, %s17
      %p14 = scmp.ge.s32.totalorder %s13, 4
      %s20 = sphi 0, %s32
      %s21 = sphi 0, %s28
      %s22 = sphi 0, %s20
      %s23 = sphi 0, %s21
      %s24 = sphi 0, %s22
      %s25 = sphi 0, %s23
      %s37 = sphi 0, %s39
      %s40 = sphi 0, %s37
      %s41 = sphi 0, %s40
      %s57 = sphi 0, %s41
      %s61 = sphi 0, %s61
      %s63 = sphi 0, %s61
      %s64 = sphi 0, %s63
      %s78 = sphi 0, %s64
      %s82 = sphi 0, %s82
      %s84 = sphi 0, %s82
      %s85 = sphi 0, %s84
      %s99 = sphi 0, %s85
      %s103 = sphi 0, %s103
      %s105 = sphi 0, %s103
      %s106 = sphi 0, %s105
      %s120 = sphi 0, %s106
      %s128 = sphi 0, %s130
      %s131 = sphi 0, %s128
      %s132 = sphi 0, %s131
      %s148 = sphi 0, %s132
    $region4: #{tpu_custom_call.1} parent=1 // loop_header_branch
      %16 = sbr.rel (%p14) target = $region8
    $region5: #{tpu_custom_call.1} parent=1 // loop_body
      %s18 = ssub.s32 %s13, 1
      %s19 = ssub.s32 %s13, 2
      %s26 = sadd.s32 1, %s21
      %p27 = scmp.ge.s32.totalorder %s26, 1
      %s28 = scalar_select %p27, 0, %s26
      %s29 = sadd.s32 1, %s20
      %s30 = scalar_select %p27, %s29, %s20
      %p31 = scmp.ge.s32.totalorder %s30, 2
      %s32 = scalar_select %p31, 0, %s30
      %s33 = ssub.s32 %s20, %s32
      %s34 = ssub.s32 %s21, %s28
      %s35 = sor.u32 %s33, %s34
      %p36 = scmp.eq.s32.totalorder %s35, 0
      %s38 = sadd.s32 %s37, 1
      %s39 = scalar_select %p36, %s37, %s38
      %p42 = pneg %p36
      %p43 = scmp.eq.s32.totalorder %s13, 1
      %p44 = por %p42, %p43
      %p45 = scmp.ne.s32.totalorder %s37, %s40
      %p46 = scmp.eq.s32.totalorder %s13, 0
      %p47 = por %p45, %p46
      %p48 = scmp.ne.s32.totalorder %s37, %s40
      %p49 = scmp.eq.s32.totalorder %s18, 1
      %p50 = por %p48, %p49
      %p51 = scmp.ne.s32.totalorder %s40, %s41
      %p52 = scmp.eq.s32.totalorder %s18, 0
      %p53 = por %p51, %p52
      %p54 = scmp.ne.s32.totalorder %s40, %s41
      %p55 = scmp.eq.s32.totalorder %s19, 1
      %p56 = por %p54, %p55
      %p58 = scmp.ne.s32.totalorder %s41, %s57
      %p59 = scmp.eq.s32.totalorder %s19, 0
      %p60 = por %p58, %p59
      %s62 = sadd.s32 %s61, 1
      %p65 = scmp.eq.s32.totalorder %s13, 1
      %p66 = scmp.ne.s32.totalorder %s61, %s63
      %p67 = scmp.eq.s32.totalorder %s13, 0
      %p68 = por %p66, %p67
      %p69 = scmp.ne.s32.totalorder %s61, %s63
      %p70 = scmp.eq.s32.totalorder %s18, 1
      %p71 = por %p69, %p70
      %p72 = scmp.ne.s32.totalorder %s63, %s64
      %p73 = scmp.eq.s32.totalorder %s18, 0
      %p74 = por %p72, %p73
      %p75 = scmp.ne.s32.totalorder %s63, %s64
      %p76 = scmp.eq.s32.totalorder %s19, 1
      %p77 = por %p75, %p76
      %p79 = scmp.ne.s32.totalorder %s64, %s78
      %p80 = scmp.eq.s32.totalorder %s19, 0
      %p81 = por %p79, %p80
      %s83 = sadd.s32 %s82, 1
      %p86 = scmp.eq.s32.totalorder %s13, 1
      %p87 = scmp.ne.s32.totalorder %s82, %s84
      %p88 = scmp.eq.s32.totalorder %s13, 0
      %p89 = por %p87, %p88
      %p90 = scmp.ne.s32.totalorder %s82, %s84
      %p91 = scmp.eq.s32.totalorder %s18, 1
      %p92 = por %p90, %p91
      %p93 = scmp.ne.s32.totalorder %s84, %s85
      %p94 = scmp.eq.s32.totalorder %s18, 0
      %p95 = por %p93, %p94
      %p96 = scmp.ne.s32.totalorder %s84, %s85
      %p97 = scmp.eq.s32.totalorder %s19, 1
      %p98 = por %p96, %p97
      %p100 = scmp.ne.s32.totalorder %s85, %s99
      %p101 = scmp.eq.s32.totalorder %s19, 0
      %p102 = por %p100, %p101
      %s104 = sadd.s32 %s103, 1
      %p107 = scmp.eq.s32.totalorder %s13, 1
      %p108 = scmp.ne.s32.totalorder %s103, %s105
      %p109 = scmp.eq.s32.totalorder %s13, 0
      %p110 = por %p108, %p109
      %p111 = scmp.ne.s32.totalorder %s103, %s105
      %p112 = scmp.eq.s32.totalorder %s18, 1
      %p113 = por %p111, %p112
      %p114 = scmp.ne.s32.totalorder %s105, %s106
      %p115 = scmp.eq.s32.totalorder %s18, 0
      %p116 = por %p114, %p115
      %p117 = scmp.ne.s32.totalorder %s105, %s106
      %p118 = scmp.eq.s32.totalorder %s19, 1
      %p119 = por %p117, %p118
      %p121 = scmp.ne.s32.totalorder %s106, %s120
      %p122 = scmp.eq.s32.totalorder %s19, 0
      %p123 = por %p121, %p122
      %s124 = ssub.s32 %s20, %s32
      %s125 = ssub.s32 %s21, %s28
      %s126 = sor.u32 %s124, %s125
      %p127 = scmp.eq.s32.totalorder %s126, 0
      %s129 = sadd.s32 %s128, 1
      %s130 = scalar_select %p127, %s128, %s129
      %p133 = pneg %p127
      %p134 = scmp.eq.s32.totalorder %s13, 1
      %p135 = por %p133, %p134
      %p136 = scmp.ne.s32.totalorder %s128, %s131
      %p137 = scmp.eq.s32.totalorder %s13, 0
      %p138 = por %p136, %p137
      %p139 = scmp.ne.s32.totalorder %s128, %s131
      %p140 = scmp.eq.s32.totalorder %s18, 1
      %p141 = por %p139, %p140
      %p142 = scmp.ne.s32.totalorder %s131, %s132
      %p143 = scmp.eq.s32.totalorder %s18, 0
      %p144 = por %p142, %p143
      %p145 = scmp.ne.s32.totalorder %s131, %s132
      %p146 = scmp.eq.s32.totalorder %s19, 1
      %p147 = por %p145, %p146
      %p149 = scmp.ne.s32.totalorder %s132, %s148
      %p150 = scmp.eq.s32.totalorder %s19, 0
      %p151 = por %p149, %p150
      %p152 = scmp.le.s32.totalorder 1, %s13
      %p153 = scmp.lt.s32.totalorder %s13, 3
      %p154 = pnand %p152, %p153
      %p155 = pneg %p154
      // Predicated region
      $region9: #{tpu_custom_call.1} parent=5 // pred_check
        _
      $region10: #{tpu_custom_call.1} parent=5 // pred_check_branch
        %157 = sbr.rel (%p154) target = $region12
      $region11: #{tpu_custom_call.1} parent=5 // pred_region
        %s158 = ssub.s32 %s13, 1
        // Predicated region
        $region13: #{tpu_custom_call.1} parent=11 // pred_check
          %p159 = pneg %p74
        $region14: #{tpu_custom_call.1} parent=11 // pred_check_branch
          %161 = sbr.rel (%p159) target = $region16
        $region15: #{tpu_custom_call.1} parent=11 // pred_region
          _
        $region16: #{tpu_custom_call.1} parent=11 // pred_fallthru
          _
        // Predicated region
        $region17: #{tpu_custom_call.1} parent=11 // pred_check
          %p162 = pneg %p95
        $region18: #{tpu_custom_call.1} parent=11 // pred_check_branch
          %164 = sbr.rel (%p162) target = $region20
        $region19: #{tpu_custom_call.1} parent=11 // pred_region
          _
        $region20: #{tpu_custom_call.1} parent=11 // pred_fallthru
          _
        // Predicated region
        $region21: #{tpu_custom_call.1} parent=11 // pred_check
          %p165 = pneg %p116
        $region22: #{tpu_custom_call.1} parent=11 // pred_check_branch
          %167 = sbr.rel (%p165) target = $region24
        $region23: #{tpu_custom_call.1} parent=11 // pred_region
          _
        $region24: #{tpu_custom_call.1} parent=11 // pred_fallthru
          _
      $region12: #{tpu_custom_call.1} parent=5 // pred_fallthru
        _
      %p168 = scmp.lt.s32.totalorder %s13, 2
      // Predicated region
      $region25: #{tpu_custom_call.1} parent=5 // pred_check
        %p169 = pneg %p168
      $region26: #{tpu_custom_call.1} parent=5 // pred_check_branch
        %171 = sbr.rel (%p169) target = $region28
      $region27: #{tpu_custom_call.1} parent=5 // pred_region
        // Predicated region
        $region29: #{tpu_custom_call.1} parent=27 // pred_check
          %p172 = pneg %p47
        $region30: #{tpu_custom_call.1} parent=27 // pred_check_branch
          %174 = sbr.rel (%p172) target = $region32
        $region31: #{tpu_custom_call.1} parent=27 // pred_region
          %p175 = scmp.lt.s32.totalorder %s20, 1
          %s176 = scalar_select %p175, %s20, 1
          %p177 = scmp.lt.s32.totalorder %s21, 0
          %s178 = scalar_select %p177, %s21, 0
          %s179 = smul.addr %s176, 2
          %s180 = sadd.s32 %s178, %s179
          %s181 = smul.addr %s180, 4
          %s182 = scalar_lea.vmem %s0, %s181
        $region32: #{tpu_custom_call.1} parent=27 // pred_fallthru
          _
      $region28: #{tpu_custom_call.1} parent=5 // pred_fallthru
        _
      %p183 = scmp.le.s32.totalorder 1, %s13
      %p184 = scmp.lt.s32.totalorder %s13, 3
      %p185 = pnand %p183, %p184
      %p186 = pneg %p185
      // Predicated region
      $region33: #{tpu_custom_call.1} parent=5 // pred_check
        _
      $region34: #{tpu_custom_call.1} parent=5 // pred_check_branch
        %188 = sbr.rel (%p185) target = $region36
      $region35: #{tpu_custom_call.1} parent=5 // pred_region
        %s189 = ssub.s32 %s13, 1
        %p190 = scmp.lt.s32.totalorder %s22, 1
        %s191 = scalar_select %p190, %s22, 1
        %p192 = scmp.lt.s32.totalorder %s23, 0
        %s193 = scalar_select %p192, %s23, 0
        %s194 = smul.addr %s191, 2
        %s195 = sadd.s32 %s193, %s194
        %s196 = smul.addr %s195, 4
        %s197 = scalar_lea.vmem %s0, %s196
        %p198 = pneg %p53
        %p199 = pneg %p50
        %p200 = pneg %p74
        %p201 = pneg %p71
        %p202 = pneg %p95
        %p203 = pneg %p92
        %p204 = pneg %p116
        %p205 = pneg %p113
        %p206 = pneg %p144
        %p207 = pneg %p141
        %s208 = sand.u32 %s131, 1
        %s209 = scalar_lea.sflag [#allocation3], %s208
        %s210 = sand.u32 %s131, 1
        %s211 = smul.addr %s210, 8
        %s212 = scalar_lea.vmem [#allocation2], %s211
        %p213 = scmp.lt.s32.totalorder %s22, 1
        %s214 = scalar_select %p213, %s22, 1
        %p215 = scmp.lt.s32.totalorder %s23, 0
        %s216 = scalar_select %p215, %s23, 0
        %s217 = smul.addr %s214, 2
        %s218 = sadd.s32 %s216, %s217
        %s219 = smul.addr %s218, 4
        %s220 = scalar_lea.vmem %s0, %s219
        %v222 = vld [vmem:[%s1] sm:$0xf]
        %v223 = vld [vmem:[%s1 + $0x4] sm:$0xf]
        %v224 = vld [vmem:[%s220] sm:$0xf]
        %v225 = vld [vmem:[%s220 + $0x4] sm:$0xf]
        %v228 = vunpack.c.l.b16 %v222
        %v229 = vunpack.c.l.b16 %v223
        %v230 = vpack.c.b16 %v229, %v228
        %v233 = vunpack.c.l.b16 %v224
        %v234 = vunpack.c.l.b16 %v225
        %v235 = vpack.c.b16 %v234, %v233
        %vm237 = vcmask 130048
        %v239 = vsel %vm237, %v230, 0
        %241 = vmatpush.bf16.msra.mxu0 0
        %242 = vmatpush.bf16.msra.mxu0 0
        %243 = vmatpush.bf16.msra.mxu0 0
        %244 = vmatpush.bf16.msra.mxu0 0
        %245 = vmatpush.bf16.msra.mxu0 0
        %246 = vmatpush.bf16.msra.mxu0 0
        %247 = vmatpush.bf16.msra.mxu0 0
        %248 = vmatpush.bf16.msra.mxu0 %v235
        %249 = vmatmul.bf16.gmra.mxu0 %v239
        %v250 = vpop.f32.mrf.mxu0
        %v251 = vadd.f32 0.0, %v250
        %v252 = vpop.f32.mrf.mxu0
        %v253 = vadd.f32 0.0, %v252
        %254 = vdwg.mxu0
        %v255 = vld [vmem:[%s2] sm:$0xff]
        %v256 = vld [vmem:[%s2 + $0x8] sm:$0xff]
        %258 = vset.pattern.permute.xlu0 0
        %259 = vperm.xlu0 %258, %v255
        %v260 = vpop.permute.xlu0 %259
        %263 = vset.pattern.permute.xlu0 0
        %264 = vperm.xlu0 %263, %v256
        %v265 = vpop.permute.xlu0 %264
        %v267 = vmul.f32 %v251, %v260
        %v268 = vmul.f32 %v253, %v265
        %v269 = vld [vmem:[%s3] sm:$0xff]
        %v270 = vld [vmem:[%s3 + $0x8] sm:$0xff]
        %272 = vset.pattern.permute.xlu0 0
        %273 = vperm.xlu0 %272, %v269
        %v274 = vpop.permute.xlu0 %273
        %277 = vset.pattern.permute.xlu0 0
        %278 = vperm.xlu0 %277, %v270
        %v279 = vpop.permute.xlu0 %278
        %v281 = vadd.f32 %v267, %v274
        %v282 = vadd.f32 %v268, %v279
        %v283 = vmax.f32 %v281, 0.0
        %v284 = vmax.f32 %v282, 0.0
        %v285 = vpack.c.bf16 %v283, %v283
        %v286 = vpack.c.bf16 %v284, %v284
        %287 = vst [vmem:[%s212] sm:$0xf] %v285
        %288 = vst [vmem:[%s212 + $0x4] sm:$0xf] %v286
        %s289 = sand.u32 %s131, 1
        %s290 = scalar_lea.sflag [#allocation3], %s289
        %s291 = sand.u32 %s131, 1
        %s292 = smul.addr %s291, 8
        %s293 = scalar_lea.vmem [#allocation2], %s292
        // Predicated region
        $region37: #{tpu_custom_call.1} parent=35 // pred_check
          %p294 = pneg %p141
        $region38: #{tpu_custom_call.1} parent=35 // pred_check_branch
          %296 = sbr.rel (%p294) target = $region40
        $region39: #{tpu_custom_call.1} parent=35 // pred_region
          %298 = vsyncadd %s290, 0
          %s299 = smul.addr %s22, 2
          %s300 = sadd.s32 %s23, %s299
          %s301 = smul.addr %s300, 4
          %s302 = scalar_lea.hbm %s4, %s301
          %s303 = sshll.u32 %s293, 4
          %s304 = int_to_ptr.vmem [resolvable:$true] %s303
          %s305 = sshll.u32 %s302, 4
          %s306 = int_to_ptr.hbm [resolvable:$true] %s305
          %311 = dma.vmem_to_hbm [thread:$0]  %s304, 128, %s306, %s290, 64, 64, 4
        $region40: #{tpu_custom_call.1} parent=35 // pred_fallthru
          _
      $region36: #{tpu_custom_call.1} parent=5 // pred_fallthru
        _
      %p312 = scmp.le.s32.totalorder 2, %s13
      // Predicated region
      $region41: #{tpu_custom_call.1} parent=5 // pred_check
        %p313 = pneg %p312
      $region42: #{tpu_custom_call.1} parent=5 // pred_check_branch
        %315 = sbr.rel (%p313) target = $region44
      $region43: #{tpu_custom_call.1} parent=5 // pred_region
        %s316 = ssub.s32 %s13, 2
        // Predicated region
        $region45: #{tpu_custom_call.1} parent=43 // pred_check
          %p317 = pneg %p147
        $region46: #{tpu_custom_call.1} parent=43 // pred_check_branch
          %319 = sbr.rel (%p317) target = $region48
        $region47: #{tpu_custom_call.1} parent=43 // pred_region
          %s320 = sand.u32 %s132, 1
          %s321 = scalar_lea.sflag [#allocation3], %s320
          %s322 = sand.u32 %s132, 1
          %s323 = smul.addr %s322, 8
          %s324 = scalar_lea.vmem [#allocation2], %s323
          %326 = dma.done %s321, 128
        $region48: #{tpu_custom_call.1} parent=43 // pred_fallthru
          _
      $region44: #{tpu_custom_call.1} parent=5 // pred_fallthru
        _
    $region6: #{tpu_custom_call.1} parent=1 // loop_footer
      %s17 = sadd.s32 1, %s13
    $region7: #{tpu_custom_call.1} parent=1 // loop_footer_branch
      %12 = sbr.rel target = $region3
    $region8: #{tpu_custom_call.1} parent=1 // loop_exit
      _
    %327 = vsyncpa [#allocation3], 1
    %s328 = scalar_lea.sflag [#allocation3], 1
    %329 = vsyncpa %s328, 1

</llo_original>
